<compile_context>
chip_gen: v7x
topology: tpu7x:2x2x1
jax: 0.10.0
libtpu: 0.0.40
codegen_flags: <defaults>
</compile_context>

<pallas_src>
import functools
import numpy as np

import jax
import jax.numpy as jnp
from jax import lax
from jax.experimental import pallas as pl
from jax.experimental.pallas import tpu as pltpu


# --------------------------- device-aware budgets ----------------------------

@functools.lru_cache(maxsize=None)
def _budget():
    """Per-generation tiling budget: v5e/v6e have 128 MiB VMEM -> bigger row
    tiles + higher vmem limit; v7x (64 MiB) / unknown stay conservative."""
    try:
        kind = jax.devices()[0].device_kind.lower()
    except Exception:
        kind = ""
    if ("v5" in kind) or ("v6" in kind):
        return {"vmem": 64 * 1024 * 1024, "tm_cap": 512, "wb_cap": 32}
    return {"vmem": 32 * 1024 * 1024, "tm_cap": 256, "wb_cap": 16}


def _cparams(n_grid_axes):
    return pltpu.CompilerParams(
        dimension_semantics=("parallel",) * n_grid_axes,
        vmem_limit_bytes=_budget()["vmem"])


def _probe_kernel(x_ref, o_ref):
    o_ref[...] = x_ref[...] + 1.0


@functools.lru_cache(maxsize=None)
def _buffered_ok():
    """Feature-test pl.Buffered(1) (single-buffered constant operands)."""
    try:
        spec = pl.BlockSpec((8, 128), lambda i: (0, 0),
                            pipeline_mode=pl.Buffered(1))
        out = pl.pallas_call(
            _probe_kernel,
            out_shape=jax.ShapeDtypeStruct((8, 128), jnp.float32),
            grid=(1,),
            in_specs=[spec],
            out_specs=pl.BlockSpec((8, 128), lambda i: (0, 0)),
        )(jnp.zeros((8, 128), jnp.float32))
        jax.block_until_ready(out)
        return True
    except Exception:
        return False


def _const_spec(shape, n_axes, buffered=False):
    """BlockSpec whose block never changes across the grid (weights/LN params/
    biases). When supported, single-buffer it (pl.Buffered(1)) so large weight
    blocks are not double-buffered in VMEM (matters at real Swin widths)."""
    nd = len(shape)
    if n_axes == 1:
        index_map = lambda i: (0,) * nd
    else:
        index_map = lambda i, j: (0,) * nd
    if buffered and _buffered_ok():
        return pl.BlockSpec(shape, index_map, pipeline_mode=pl.Buffered(1))
    return pl.BlockSpec(shape, index_map)


def _pick_tile(M, cap):
    """Largest row tile <= cap that is a multiple of 8 and divides M (else M)."""
    if M <= cap:
        return M
    for t in range(cap - cap % 8, 7, -8):
        if M % t == 0:
            return t
    return M


def _pick_tile_n(N, cap=512):
    """Largest lane tile <= cap that is a multiple of 128 and divides N (else N)."""
    if N <= cap:
        return N
    for t in range(cap - cap % 128, 127, -128):
        if N % t == 0:
            return t
    return N


def _pick_div(n, cap):
    for t in range(min(n, cap), 0, -1):
        if n % t == 0:
            return t
    return 1


def _pick_hchunk(Hd, cap=1024):
    """Hidden-dim chunk for the MLP kernel (multiple of 128 when tiled)."""
    if Hd <= cap:
        return Hd
    for t in range(cap - cap % 128, 127, -128):
        if Hd % t == 0:
            return t
    return Hd


# ------------------------------ Pallas kernels -------------------------------

def _ln_rows(x, g, b, eps):
    """Row-wise LayerNorm of an f32 tile; gamma/beta are (1, D)."""
    mean = jnp.mean(x, axis=-1, keepdims=True)
    var = jnp.mean(jnp.square(x - mean), axis=-1, keepdims=True)
    return ((x - mean) * lax.rsqrt(var + eps) * g.astype(jnp.float32)
            + b.astype(jnp.float32))


def _attn_kernel(x_ref, g_ref, bln_ref, qkvw_ref, qkvb_ref, bias_ref,
                 projw_ref, projb_ref, o_ref, *, heads, scale, eps):
    """Fused window attention branch for one group of windows:

      LN1 -> single (C,3C) QKV matmul -> per-head softmax attention
      -> output projection (accumulated head-by-head; no concat)

    x block:    (WB, N, C) f32
    bias block: (nwb, heads, N, N) bf16, nwb == WB (shifted) or 1 (broadcast).
    output:     (WB, N, C) bf16 (pre-residual attention branch).
    """
    WB, N, C = x_ref.shape
    hd = C // heads

    x = x_ref[...].astype(jnp.float32).reshape(WB * N, C)
    y = _ln_rows(x, g_ref[...], bln_ref[...], eps).astype(jnp.bfloat16)

    # One MXU pass over the full (C, 3C) weight (fills the MXU better than 3x C).
    qkv = jnp.dot(y, qkvw_ref[...].astype(jnp.bfloat16),
                  preferred_element_type=jnp.float32)
    qkv = qkv + qkvb_ref[...].astype(jnp.float32)          # (WB*N, 3C) f32

    bias = bias_ref[...].astype(jnp.float32)               # (nwb, heads, N, N)

    acc = jnp.zeros((WB * N, C), jnp.float32)
    for h in range(heads):
        lo, hi = h * hd, (h + 1) * hd
        q = qkv[:, lo:hi].reshape(WB, N, hd).astype(jnp.bfloat16)
        k = qkv[:, C + lo:C + hi].reshape(WB, N, hd).astype(jnp.bfloat16)
        v = qkv[:, 2 * C + lo:2 * C + hi].reshape(WB, N, hd).astype(jnp.bfloat16)

        attn = jnp.einsum("wnd,wmd->wnm", q, k,
                          preferred_element_type=jnp.float32) * scale
        attn = attn + bias[:, h, :, :]                     # broadcasts if nwb == 1
        attn = attn - jnp.max(attn, axis=-1, keepdims=True)
        p = jnp.exp(attn)
        p = p * pl.reciprocal(jnp.sum(p, axis=-1, keepdims=True), approx=True)

        ctx = jnp.einsum("wnm,wmd->wnd", p.astype(jnp.bfloat16), v,
                         preferred_element_type=jnp.float32)     # (WB, N, hd)
        # Fused output projection: accumulate this head's contribution.
        acc = acc + jnp.dot(ctx.reshape(WB * N, hd).astype(jnp.bfloat16),
                            projw_ref[lo:hi, :].astype(jnp.bfloat16),
                            preferred_element_type=jnp.float32)

    acc = acc + projb_ref[...].astype(jnp.float32)
    o_ref[...] = acc.reshape(WB, N, C).astype(o_ref.dtype)


def window_attention_block(xw, gamma, beta, qkv_w, qkv_b, bias_comb,
                           proj_w, proj_b, *, heads, scale, eps=1e-5):
    """xw: (B_, N, C) f32 windows -> (B_, N, C) bf16 attention branch."""
    B_, N, C = xw.shape
    nwb = bias_comb.shape[0]
    if nwb > 1:
        assert B_ % nwb == 0
        WB = nwb                              # one image's windows per step
    else:
        WB = _pick_div(B_, _budget()["wb_cap"])
    xw_spec = pl.BlockSpec((WB, N, C), lambda i: (i, 0, 0))
    return pl.pallas_call(
        functools.partial(_attn_kernel, heads=heads, scale=scale, eps=eps),
        out_shape=jax.ShapeDtypeStruct((B_, N, C), jnp.bfloat16),
        grid=(B_ // WB,),
        in_specs=[xw_spec,
                  _const_spec((1, C), 1, True), _const_spec((1, C), 1, True),
                  _const_spec((C, 3 * C), 1, True),
                  _const_spec((1, 3 * C), 1, True),
                  _const_spec(tuple(bias_comb.shape), 1, True),
                  _const_spec((C, C), 1, True), _const_spec((1, C), 1, True)],
        out_specs=pl.BlockSpec((WB, N, C), lambda i: (i, 0, 0)),
        compiler_params=_cparams(1),
    )(xw, gamma.reshape(1, C), beta.reshape(1, C),
      qkv_w, qkv_b.reshape(1, 3 * C), bias_comb, proj_w, proj_b.reshape(1, C))


def _mlp_kernel(s_ref, a_ref, g_ref, b_ref, w1_ref, b1_ref, w2_ref, b2_ref,
                o_ref, *, eps, hchunk):
    """Fused: (shortcut + attn) -> LN2 -> fc1 -> GELU -> fc2 -> + residual.

    The hidden activation is processed in `hchunk`-wide chunks so it never
    leaves VMEM and its live tile stays small at real widths.
    """
    x = s_ref[...].astype(jnp.float32) + a_ref[...].astype(jnp.float32)
    y = _ln_rows(x, g_ref[...], b_ref[...], eps).astype(jnp.bfloat16)
    Hd = w1_ref.shape[1]
    acc = jnp.zeros(x.shape, jnp.float32)
    for lo in range(0, Hd, hchunk):
        hi = lo + hchunk
        h = jnp.dot(y, w1_ref[:, lo:hi].astype(jnp.bfloat16),
                    preferred_element_type=jnp.float32)
        h = h + b1_ref[:, lo:hi].astype(jnp.float32)
        h = jax.nn.gelu(h, approximate=False)     # exact erf GELU (torch.nn.GELU)
        acc = acc + jnp.dot(h.astype(jnp.bfloat16),
                            w2_ref[lo:hi, :].astype(jnp.bfloat16),
                            preferred_element_type=jnp.float32)
    acc = acc + b2_ref[...].astype(jnp.float32)
    o_ref[...] = (x + acc).astype(o_ref.dtype)


def mlp_block(shortcut2d, attn2d, gamma, beta, w1, b1, w2, b2, eps=1e-5):
    M, C = shortcut2d.shape
    Hd = w1.shape[1]
    TM = _pick_tile(M, _budget()["tm_cap"])
    hchunk = _pick_hchunk(Hd)
    row_spec = pl.BlockSpec((TM, C), lambda i: (i, 0))
    return pl.pallas_call(
        functools.partial(_mlp_kernel, eps=eps, hchunk=hchunk),
        out_shape=jax.ShapeDtypeStruct((M, C), jnp.float32),
        grid=(M // TM,),
        in_specs=[row_spec, pl.BlockSpec((TM, C), lambda i: (i, 0)),
                  _const_spec((1, C), 1, True), _const_spec((1, C), 1, True),
                  _const_spec((C, Hd), 1, True), _const_spec((1, Hd), 1, True),
                  _const_spec((Hd, C), 1, True), _const_spec((1, C), 1, True)],
        out_specs=pl.BlockSpec((TM, C), lambda i: (i, 0)),
        compiler_params=_cparams(1),
    )(shortcut2d, attn2d, gamma.reshape(1, C), beta.reshape(1, C),
      w1, b1.reshape(1, Hd), w2, b2.reshape(1, C))


def _gemm_kernel(*refs, has_ln_in, has_bias, act, has_ln_out, eps):
    """x [-> LN] @ W [+ b] [-> GELU] [-> LN] ; bf16 MXU operands, f32 accum."""
    idx = 0
    x_ref = refs[idx]; idx += 1
    gi_ref = bi_ref = b_ref = go_ref = bo_ref = None
    if has_ln_in:
        gi_ref, bi_ref = refs[idx], refs[idx + 1]; idx += 2
    w_ref = refs[idx]; idx += 1
    if has_bias:
        b_ref = refs[idx]; idx += 1
    if has_ln_out:
        go_ref, bo_ref = refs[idx], refs[idx + 1]; idx += 2
    o_ref = refs[idx]

    if has_ln_in:
        x = x_ref[...].astype(jnp.float32)
        xb = _ln_rows(x, gi_ref[...], bi_ref[...], eps).astype(jnp.bfloat16)
    else:
        xb = x_ref[...].astype(jnp.bfloat16)      # single cast (v5e VPU-friendly)
    acc = jnp.dot(xb, w_ref[...].astype(jnp.bfloat16),
                  preferred_element_type=jnp.float32)
    if has_bias:
        acc = acc + b_ref[...].astype(jnp.float32)
    if act == "gelu":
        acc = jax.nn.gelu(acc, approximate=False)
    if has_ln_out:
        acc = _ln_rows(acc, go_ref[...], bo_ref[...], eps)
    o_ref[...] = acc.astype(o_ref.dtype)


def gemm(x, w, bias=None, ln_in=None, ln_out=None, act="none",
         out_dtype=jnp.float32, tn_cap=512, eps=1e-5):
    """Tiled (M, K) @ (K, N) with optional fused input-LN / bias / GELU / output-LN."""
    M, K = x.shape
    Kw, N = w.shape
    assert K == Kw
    TM = _pick_tile(M, _budget()["tm_cap"])
    TN = N if ln_out is not None else _pick_tile_n(N, tn_cap)
    gm, gn = M // TM, N // TN
    col_const = (gn == 1)

    args = [x]
    in_specs = [pl.BlockSpec((TM, K), lambda i, j: (i, 0))]
    if ln_in is not None:
        gi, bi = ln_in
        args += [gi.reshape(1, K), bi.reshape(1, K)]
        in_specs += [_const_spec((1, K), 2, True)] * 2
    args.append(w)
    if col_const:
        in_specs.append(_const_spec((K, TN), 2, True))
    else:
        in_specs.append(pl.BlockSpec((K, TN), lambda i, j: (0, j)))
    if bias is not None:
        args.append(bias.reshape(1, N))
        if col_const:
            in_specs.append(_const_spec((1, TN), 2, True))
        else:
            in_specs.append(pl.BlockSpec((1, TN), lambda i, j: (0, j)))
    if ln_out is not None:
        go, bo = ln_out
        args += [go.reshape(1, N), bo.reshape(1, N)]
        in_specs += [_const_spec((1, TN), 2, True)] * 2   # TN == N here

    kernel = functools.partial(
        _gemm_kernel, has_ln_in=ln_in is not None, has_bias=bias is not None,
        act=act, has_ln_out=ln_out is not None, eps=eps)
    return pl.pallas_call(
        kernel,
        out_shape=jax.ShapeDtypeStruct((M, N), out_dtype),
        grid=(gm, gn),
        in_specs=in_specs,
        out_specs=pl.BlockSpec((TM, TN), lambda i, j: (i, j)),
        compiler_params=_cparams(2),
    )(*args)


def _ln_kernel(x_ref, g_ref, b_ref, o_ref, *, eps):
    o_ref[...] = _ln_rows(x_ref[...].astype(jnp.float32), g_ref[...],
                          b_ref[...], eps).astype(o_ref.dtype)


def layer_norm(x2d, gamma, beta, eps=1e-5):
    M, D = x2d.shape
    TM = _pick_tile(M, _budget()["tm_cap"])
    return pl.pallas_call(
        functools.partial(_ln_kernel, eps=eps),
        out_shape=jax.ShapeDtypeStruct((M, D), jnp.float32),
        grid=(M // TM,),
        in_specs=[pl.BlockSpec((TM, D), lambda i: (i, 0)),
                  _const_spec((1, D), 1, True), _const_spec((1, D), 1, True)],
        out_specs=pl.BlockSpec((TM, D), lambda i: (i, 0)),
        compiler_params=_cparams(1),
    )(x2d, gamma.reshape(1, D), beta.reshape(1, D))


# -------------------------------- glue (JAX) ---------------------------------

def window_partition(x, ws):
    B, H, W, C = x.shape
    x = x.reshape(B, H // ws, ws, W // ws, ws, C)
    return x.transpose(0, 1, 3, 2, 4, 5).reshape(-1, ws, ws, C)


def window_reverse(windows, ws, H, W, B):
    x = windows.reshape(B, H // ws, W // ws, ws, ws, -1)
    return x.transpose(0, 1, 3, 2, 4, 5).reshape(B, H, W, -1)


def relative_position_index(ws):
    coords = np.stack(np.meshgrid(np.arange(ws), np.arange(ws), indexing="ij"))
    coords_flat = coords.reshape(2, -1)
    rel = coords_flat[:, :, None] - coords_flat[:, None, :]
    rel = rel.transpose(1, 2, 0).astype(np.int64)
    rel[:, :, 0] += ws - 1
    rel[:, :, 1] += ws - 1
    rel[:, :, 0] *= 2 * ws - 1
    return jnp.asarray(rel.sum(-1), dtype=jnp.int32)  # (N, N)


def compute_attn_mask(H, W, ws, ss):
    img_mask = np.zeros((1, H, W, 1), np.float32)
    cnt = 0
    for h in (slice(0, -ws), slice(-ws, -ss), slice(-ss, None)):
        for w in (slice(0, -ws), slice(-ws, -ss), slice(-ss, None)):
            img_mask[:, h, w, :] = cnt
            cnt += 1
    m = img_mask.reshape(1, H // ws, ws, W // ws, ws, 1)
    m = m.transpose(0, 1, 3, 2, 4, 5).reshape(-1, ws * ws)
    am = m[:, None, :] - m[:, :, None]
    am = np.where(am != 0, -100.0, 0.0).astype(np.float32)
    return jnp.asarray(am)  # (nW, N, N)


# -------------------------------- parameters ---------------------------------

class KeyGen:
    def __init__(self, seed=0):
        self.key = jax.random.PRNGKey(seed)

    def __call__(self):
        self.key, sub = jax.random.split(self.key)
        return sub


def tnorm(kg, shape, std=0.02):
    return std * jax.random.normal(kg(), shape, dtype=jnp.float32)


def init_params(kg, cfg):
    ps, in_chans, embed_dim = cfg["patch_size"], cfg["in_chans"], cfg["embed_dim"]
    f32, bf16 = jnp.float32, jnp.bfloat16

    def w_init(shape):                      # MXU-operand weights stored in bf16
        return tnorm(kg, shape).astype(bf16)

    params = {
        "patch_embed": {
            # Conv2d(C_in, D, ps, stride=ps) weight pre-flattened as (C*ps*ps, D).
            "proj_w": w_init((in_chans * ps * ps, embed_dim)),
            "proj_b": jnp.zeros((embed_dim,), f32),
            "norm_g": jnp.ones((embed_dim,), f32),
            "norm_b": jnp.zeros((embed_dim,), f32),
        }
    }
    layers = []
    dim = embed_dim
    res = cfg["img_size"] // ps
    for i_layer, (depth, heads) in enumerate(zip(cfg["depths"], cfg["num_heads"])):
        ws_eff = min(cfg["window_size"], res)
        hidden = int(dim * cfg["mlp_ratio"])
        blocks = []
        for _ in range(depth):
            blocks.append({
                "norm1_g": jnp.ones((dim,), f32), "norm1_b": jnp.zeros((dim,), f32),
                "qkv_w": w_init((dim, 3 * dim)), "qkv_b": jnp.zeros((3 * dim,), f32),
                "rel_table": tnorm(kg, ((2 * ws_eff - 1) ** 2, heads)),
                "proj_w": w_init((dim, dim)), "proj_b": jnp.zeros((dim,), f32),
                "norm2_g": jnp.ones((dim,), f32), "norm2_b": jnp.zeros((dim,), f32),
                "fc1_w": w_init((dim, hidden)), "fc1_b": jnp.zeros((hidden,), f32),
                "fc2_w": w_init((hidden, dim)), "fc2_b": jnp.zeros((dim,), f32),
            })
        layer = {"blocks": blocks}
        if i_layer < len(cfg["depths"]) - 1:
            layer["downsample"] = {
                "norm_g": jnp.ones((4 * dim,), f32), "norm_b": jnp.zeros((4 * dim,), f32),
                "red_w": w_init((4 * dim, 2 * dim)),   # Linear(4C, 2C, bias=False)
            }
            dim *= 2
            res //= 2
        layers.append(layer)
    params["layers"] = layers
    params["norm_g"] = jnp.ones((dim,), f32)
    params["norm_b"] = jnp.zeros((dim,), f32)
    params["head_w"] = w_init((dim, cfg["num_classes"]))
    params["head_b"] = jnp.zeros((cfg["num_classes"],), f32)
    return params


# ------------------------------- model forward -------------------------------

def swin_block(x, p, B, H, W, C, heads, ws, ss, bias_comb):
    L = H * W
    shortcut2d = x.reshape(B * L, C)                       # f32 residual stream
    xs = x.reshape(B, H, W, C)
    if ss > 0:
        xs = jnp.roll(xs, shift=(-ss, -ss), axis=(1, 2))
    xw = window_partition(xs, ws).reshape(-1, ws * ws, C)  # (B_, N, C)
    head_dim = C // heads

    # Fused LN1 + QKV + windowed MHSA + output projection (bf16 stream out).
    attn = window_attention_block(
        xw, p["norm1_g"], p["norm1_b"], p["qkv_w"], p["qkv_b"],
        bias_comb, p["proj_w"], p["proj_b"],
        heads=heads, scale=head_dim ** -0.5)                # (B_, N, C) bf16

    attn = attn.reshape(-1, ws, ws, C)
    xs = window_reverse(attn, ws, H, W, B)
    if ss > 0:
        xs = jnp.roll(xs, shift=(ss, ss), axis=(1, 2))
    attn2d = xs.reshape(B * L, C)                           # bf16 branch output

    # Fused attention-residual + LN2 + MLP (chunked hidden) + MLP-residual.
    y = mlp_block(shortcut2d, attn2d, p["norm2_g"], p["norm2_b"],
                  p["fc1_w"], p["fc1_b"], p["fc2_w"], p["fc2_b"])
    return y.reshape(B, L, C)


def patch_merging(x, p, B, H, W, C):
    x = x.reshape(B, H, W, C)
    x0 = x[:, 0::2, 0::2, :]
    x1 = x[:, 1::2, 0::2, :]
    x2 = x[:, 0::2, 1::2, :]
    x3 = x[:, 1::2, 1::2, :]
    x = jnp.concatenate([x0, x1, x2, x3], axis=-1)
    x = x.reshape(B * (H // 2) * (W // 2), 4 * C)
    # Fused LayerNorm(4C) + bias-free reduction Linear(4C -> 2C).
    x = gemm(x, p["red_w"], bias=None, ln_in=(p["norm_g"], p["norm_b"]))
    return x.reshape(B, (H // 2) * (W // 2), 2 * C)


def swin_forward(params, img, cfg):
    """img: NCHW float32 (B, in_chans, img_size, img_size) -> (B, num_classes)."""
    B, C_in, Himg, Wimg = img.shape
    ps = cfg["patch_size"]
    Hp, Wp = Himg // ps, Wimg // ps

    # Patch embed: Conv2d(C_in, D, ps, stride=ps) == patch extraction + matmul,
    # with the trailing LayerNorm fused into the same kernel.
    x = img.reshape(B, C_in, Hp, ps, Wp, ps)
    x = x.transpose(0, 2, 4, 1, 3, 5).reshape(B * Hp * Wp, C_in * ps * ps)
    pe = params["patch_embed"]
    x = gemm(x, pe["proj_w"], bias=pe["proj_b"],
             ln_out=(pe["norm_g"], pe["norm_b"]))
    x = x.reshape(B, Hp * Wp, cfg["embed_dim"])

    H, W, dim = Hp, Wp, cfg["embed_dim"]
    for i_layer, layer in enumerate(params["layers"]):
        heads = cfg["num_heads"][i_layer]
        ws = cfg["window_size"]
        if min(H, W) <= ws:
            ws_eff, base_shift = min(H, W), 0
        else:
            ws_eff, base_shift = ws, ws // 2
        N = ws_eff * ws_eff
        rel_index = relative_position_index(ws_eff)
        shift_mask = (compute_attn_mask(H, W, ws_eff, base_shift)
                      if base_shift > 0 else None)
        for i_blk, bp in enumerate(layer["blocks"]):
            ss = 0 if (i_blk % 2 == 0) else base_shift
            # Batch-independent combined bias: (nW or 1, heads, N, N), bf16.
            rel_bias = bp["rel_table"][rel_index.reshape(-1)]
            rel_bias = rel_bias.reshape(N, N, heads).transpose(2, 0, 1)
            if ss > 0:
                bias_comb = rel_bias[None, :, :, :] + shift_mask[:, None, :, :]
            else:
                bias_comb = rel_bias[None, :, :, :]
            bias_comb = bias_comb.astype(jnp.bfloat16)
            x = swin_block(x, bp, B, H, W, dim, heads, ws_eff, ss, bias_comb)
        if "downsample" in layer:
            x = patch_merging(x, layer["downsample"], B, H, W, dim)
            H, W, dim = H // 2, W // 2, dim * 2

    x = layer_norm(x.reshape(B * H * W, dim), params["norm_g"], params["norm_b"])
    x = x.reshape(B, H * W, dim)
    # TODO(synk): AdaptiveAvgPool1d(1) over tokens kept as a plain-JAX reduction.
    x = jnp.mean(x, axis=1)
    logits = gemm(x, params["head_w"], bias=params["head_b"])
    return logits


# ----------------------------------- main -------------------------------------

if __name__ == "__main__":
    # Small-shape Swin config (structure of swin_base_patch4_window7_224,
    # scaled down: 2 stages, embed_dim 32, window 4, 32x32 RGB input).
    cfg = dict(
        img_size=32, patch_size=4, in_chans=3, embed_dim=32,
        depths=(2, 2), num_heads=(2, 4), window_size=4,
        mlp_ratio=4.0, num_classes=10,
    )
    kg = KeyGen(0)
    params = init_params(kg, cfg)

    img = jax.random.normal(
        jax.random.PRNGKey(0),
        (2, cfg["in_chans"], cfg["img_size"], cfg["img_size"]),
        dtype=jnp.float32)

    logits = swin_forward(params, img, cfg)
    logits = jax.block_until_ready(logits)
    assert logits.shape == (2, cfg["num_classes"]), logits.shape
    assert bool(jnp.all(jnp.isfinite(logits)))
    print("KERNEL_OK")
</pallas_src>

<mosaic_0001>
module attributes {stable_mosaic.version = 11 : i64} {
  func.func @_probe_kernel(%arg0: i32, %arg1: memref<8x128xf32, #tpu.memory_space<vmem>>, %arg2: memref<8x128xf32, #tpu.memory_space<vmem>>) attributes {dimension_semantics = [#tpu.dimension_semantics<arbitrary>], iteration_bounds = array<i64: 1>, scalar_prefetch = 0 : i64, scratch_operands = 0 : i64, tpu.core_type = #tpu.core_type<tc>, window_params = [{pipeline_mode = #tpu.pipeline_mode<synchronous>, transform_indices = @transform_0, window_bounds = array<i64: 8, 128>}, {pipeline_mode = #tpu.pipeline_mode<synchronous>, transform_indices = @transform_1, window_bounds = array<i64: 8, 128>}]} {
    %c0 = arith.constant 0 : index
    %c0_0 = arith.constant 0 : index
    %0 = vector.load %arg1[%c0, %c0_0] : memref<8x128xf32, #tpu.memory_space<vmem>>, vector<8x128xf32>
    %cst = arith.constant 1.000000e+00 : f32
    %1 = vector.broadcast %cst : f32 to vector<8x128xf32>
    %2 = arith.addf %0, %1 : vector<8x128xf32>
    %c0_1 = arith.constant 0 : index
    %c0_2 = arith.constant 0 : index
    %3 = vector.load %arg2[%c0_1, %c0_2] : memref<8x128xf32, #tpu.memory_space<vmem>>, vector<8x128xf32>
    tpu.vector_store %arg2[%c0_1, %c0_2], %2 {strides = array<i32>} : memref<8x128xf32, #tpu.memory_space<vmem>>, vector<8x128xf32>,
    return
  }
  func.func @transform_0(%arg0: i32) -> (i32, i32) {
    %c0_i32 = arith.constant 0 : i32
    %c0_i32_0 = arith.constant 0 : i32
    %c0_i32_1 = arith.constant 0 : i32
    return %c0_i32, %c0_i32_0 : i32, i32
  }
  func.func @transform_1(%arg0: i32) -> (i32, i32) {
    %c0_i32 = arith.constant 0 : i32
    %c0_i32_0 = arith.constant 0 : i32
    %c0_i32_1 = arith.constant 0 : i32
    return %c0_i32, %c0_i32_0 : i32, i32
  }
}

module attributes {stable_mosaic.version = 11 : i64} {
  func.func @_gemm_kernel(%arg0: i32, %arg1: i32, %arg2: memref<128x48xf32, #tpu.memory_space<vmem>>, %arg3: memref<48x32xbf16, #tpu.memory_space<vmem>>, %arg4: memref<1x32xf32, #tpu.memory_space<vmem>>, %arg5: memref<1x32xf32, #tpu.memory_space<vmem>>, %arg6: memref<1x32xf32, #tpu.memory_space<vmem>>, %arg7: memref<128x32xf32, #tpu.memory_space<vmem>>) attributes {dimension_semantics = [#tpu.dimension_semantics<parallel>, #tpu.dimension_semantics<parallel>], iteration_bounds = array<i64: 1, 1>, scalar_prefetch = 0 : i64, scratch_operands = 0 : i64, tpu.core_type = #tpu.core_type<tc>, window_params = [{transform_indices = @transform_0, window_bounds = array<i64: 128, 48>}, {pipeline_mode = #tpu.pipeline_mode<synchronous>, transform_indices = @transform_1, window_bounds = array<i64: 48, 32>}, {pipeline_mode = #tpu.pipeline_mode<synchronous>, transform_indices = @transform_2, window_bounds = array<i64: 1, 32>}, {pipeline_mode = #tpu.pipeline_mode<synchronous>, transform_indices = @transform_3, window_bounds = array<i64: 1, 32>}, {pipeline_mode = #tpu.pipeline_mode<synchronous>, transform_indices = @transform_4, window_bounds = array<i64: 1, 32>}, {transform_indices = @transform_5, window_bounds = array<i64: 128, 32>}]} {
    %c0 = arith.constant 0 : index
    %c0_0 = arith.constant 0 : index
    %0 = vector.load %arg2[%c0, %c0_0] : memref<128x48xf32, #tpu.memory_space<vmem>>, vector<128x48xf32>
    %1 = arith.truncf %0 : vector<128x48xf32> to vector<128x48xbf16>
    %c0_1 = arith.constant 0 : index
    %c0_2 = arith.constant 0 : index
    %2 = vector.load %arg3[%c0_1, %c0_2] : memref<48x32xbf16, #tpu.memory_space<vmem>>, vector<48x32xbf16>
    %cst = arith.constant dense<0.000000e+00> : vector<128x32xf32>
    %3 = tpu.matmul %1, %2, %cst {dimension_numbers = #tpu.dot_dimension_numbers<[1], [0], [0], [1], [0, 0, 1, 1], [], []>} : vector<128x48xbf16>, vector<48x32xbf16>, vector<128x32xf32> -> vector<128x32xf32>
    %c0_3 = arith.constant 0 : index
    %c0_4 = arith.constant 0 : index
    %4 = vector.load %arg4[%c0_3, %c0_4] : memref<1x32xf32, #tpu.memory_space<vmem>>, vector<1x32xf32>
    %5 = vector.broadcast %4 : vector<1x32xf32> to vector<128x32xf32>
    %6 = arith.addf %3, %5 : vector<128x32xf32>
    %c0_5 = arith.constant 0 : index
    %c0_6 = arith.constant 0 : index
    %7 = vector.load %arg5[%c0_5, %c0_6] : memref<1x32xf32, #tpu.memory_space<vmem>>, vector<1x32xf32>
    %c0_7 = arith.constant 0 : index
    %c0_8 = arith.constant 0 : index
    %8 = vector.load %arg6[%c0_7, %c0_8] : memref<1x32xf32, #tpu.memory_space<vmem>>, vector<1x32xf32>
    %cst_9 = arith.constant dense<0.000000e+00> : vector<128xf32>
    %9 = vector.multi_reduction <add>, %6, %cst_9 [1] : vector<128x32xf32> to vector<128xf32>
    %10 = vector.shape_cast %9 : vector<128xf32> to vector<128x1xf32>
    %cst_10 = arith.constant 3.200000e+01 : f32
    %11 = vector.broadcast %cst_10 : f32 to vector<128x1xf32>
    %12 = arith.divf %10, %11 : vector<128x1xf32>
    %13 = vector.broadcast %12 : vector<128x1xf32> to vector<128x32xf32>
    %14 = arith.subf %6, %13 : vector<128x32xf32>
    %15 = arith.mulf %14, %14 : vector<128x32xf32>
    %cst_11 = arith.constant dense<0.000000e+00> : vector<128xf32>
    %16 = vector.multi_reduction <add>, %15, %cst_11 [1] : vector<128x32xf32> to vector<128xf32>
    %17 = vector.shape_cast %16 : vector<128xf32> to vector<128x1xf32>
    %cst_12 = arith.constant 3.200000e+01 : f32
    %18 = vector.broadcast %cst_12 : f32 to vector<128x1xf32>
    %19 = arith.divf %17, %18 : vector<128x1xf32>
    %20 = vector.broadcast %12 : vector<128x1xf32> to vector<128x32xf32>
    %21 = arith.subf %6, %20 : vector<128x32xf32>
    %cst_13 = arith.constant 9.99999974E-6 : f32
    %22 = vector.broadcast %cst_13 : f32 to vector<128x1xf32>
    %23 = arith.addf %19, %22 : vector<128x1xf32>
    %24 = math.rsqrt %23 : vector<128x1xf32>
    %25 = vector.broadcast %24 : vector<128x1xf32> to vector<128x32xf32>
    %26 = arith.mulf %21, %25 : vector<128x32xf32>
    %27 = vector.broadcast %7 : vector<1x32xf32> to vector<128x32xf32>
    %28 = arith.mulf %26, %27 : vector<128x32xf32>
    %29 = vector.broadcast %8 : vector<1x32xf32> to vector<128x32xf32>
    %30 = arith.addf %28, %29 : vector<128x32xf32>
    %c0_14 = arith.constant 0 : index
    %c0_15 = arith.constant 0 : index
    %31 = vector.load %arg7[%c0_14, %c0_15] : memref<128x32xf32, #tpu.memory_space<vmem>>, vector<128x32xf32>
    tpu.vector_store %arg7[%c0_14, %c0_15], %30 {strides = array<i32>} : memref<128x32xf32, #tpu.memory_space<vmem>>, vector<128x32xf32>,
    return
  }
  func.func @transform_0(%arg0: i32, %arg1: i32) -> (i32, i32) {
    %c0_i32 = arith.constant 0 : i32
    %c0_i32_0 = arith.constant 0 : i32
    return %arg0, %c0_i32 : i32, i32
  }
  func.func @transform_1(%arg0: i32, %arg1: i32) -> (i32, i32) {
    %c0_i32 = arith.constant 0 : i32
    %c0_i32_0 = arith.constant 0 : i32
    %c0_i32_1 = arith.constant 0 : i32
    return %c0_i32, %c0_i32_0 : i32, i32
  }
  func.func @transform_2(%arg0: i32, %arg1: i32) -> (i32, i32) {
    %c0_i32 = arith.constant 0 : i32
    %c0_i32_0 = arith.constant 0 : i32
    %c0_i32_1 = arith.constant 0 : i32
    return %c0_i32, %c0_i32_0 : i32, i32
  }
  func.func @transform_3(%arg0: i32, %arg1: i32) -> (i32, i32) {
    %c0_i32 = arith.constant 0 : i32
    %c0_i32_0 = arith.constant 0 : i32
    %c0_i32_1 = arith.constant 0 : i32
    return %c0_i32, %c0_i32_0 : i32, i32
  }
  func.func @transform_4(%arg0: i32, %arg1: i32) -> (i32, i32) {
    %c0_i32 = arith.constant 0 : i32
    %c0_i32_0 = arith.constant 0 : i32
    %c0_i32_1 = arith.constant 0 : i32
    return %c0_i32, %c0_i32_0 : i32, i32
  }
  func.func @transform_5(%arg0: i32, %arg1: i32) -> (i32, i32) {
    %c0_i32 = arith.constant 0 : i32
    return %arg0, %arg1 : i32, i32
  }
}

</mosaic_0001>

<llo_original>
// kernel: tpu_custom_call.1
$region0: #{tpu_custom_call.1}
  #allocation0 [shape = 'u32[]', space=smem, size = 0x4, offset = 0x4, fixed_abs, tag = 'smem constant byte address 0x4 - core index']
  #allocation1 [shape = 'u32[144,128]{1,0:T(1,128)}', space=vmem, size = 0x12000, scoped, tag = 'internal scratch']
  %s0 = inlined_call_operand.hbm [shape: f32[8,128], index: 0, kind: input, shape index: {}]
  %s1 = inlined_call_operand.hbm [shape: f32[8,128], index: 1, kind: output, shape index: {}]
  %s2 = sld [smem:[#allocation0]]
  $region18: #{tpu_custom_call.1} parent=0
    _
  %s4 = ssub.s32 1, %s2
  %s5 = scalar_select 0, %s4, %s2
  $region1: #{tpu_custom_call.1} parent=0
    #allocation2 [shape = 'u8[4096]{0}', space=vmem, size = 0x1000, scoped, tag = 'input window, operand 0, single buffered']
    #allocation3 [shape = 's32[1]{0}', space=sflag, size = 0x4, scoped, tag = 'scoped memory for tpu_custom_call.1']
    #allocation4 [shape = 's32[1]{0}', space=sflag, size = 0x4, scoped, tag = 'scoped memory for tpu_custom_call.1']
    #allocation5 [shape = 'u8[4096]{0}', space=vmem, size = 0x1000, scoped, tag = 'output window, operand 0, single buffered']
    %6 = vsyncpa [#allocation3], 0
    %7 = vsyncpa [#allocation4], 0
    // Predicated region
    $region2: #{tpu_custom_call.1} parent=1 // pred_check
      _
    $region3: #{tpu_custom_call.1} parent=1 // pred_check_branch
      %9 = sbr.rel (0) target = $region5
    $region4: #{tpu_custom_call.1} parent=1 // pred_region
      %s11 = ssub.s32 128, 128
      %12 = vsyncadd [#allocation3], %s11
      %s14 = sshll.u32 [#allocation2], 4
      %s15 = int_to_ptr.vmem [resolvable:$true] %s14
      %17 = dma.hbm_to_vmem [thread:$0]  %s0, 128, %s15, [#allocation3]
    $region5: #{tpu_custom_call.1} parent=1 // pred_fallthru
      _
    // Predicated region
    $region6: #{tpu_custom_call.1} parent=1 // pred_check
      _
    $region7: #{tpu_custom_call.1} parent=1 // pred_check_branch
      %19 = sbr.rel (0) target = $region9
    $region8: #{tpu_custom_call.1} parent=1 // pred_region
      %20 = dma.done [#allocation3], 128
    $region9: #{tpu_custom_call.1} parent=1 // pred_fallthru
      _
    %v21 = vld [vmem:[#allocation2] sm:$0xff]
    %v22 = vadd.f32 %v21, 1.0
    %23 = vst [vmem:[#allocation5] sm:$0xff] %v22
    // Predicated region
    $region10: #{tpu_custom_call.1} parent=1 // pred_check
      _
    $region11: #{tpu_custom_call.1} parent=1 // pred_check_branch
      %25 = sbr.rel (0) target = $region13
    $region12: #{tpu_custom_call.1} parent=1 // pred_region
      %s27 = ssub.s32 128, 128
      %28 = vsyncadd [#allocation4], %s27
      %s30 = sshll.u32 [#allocation5], 4
      %s31 = int_to_ptr.vmem [resolvable:$true] %s30
      %33 = dma.vmem_to_hbm [thread:$0]  %s31, 128, %s1, [#allocation4]
    $region13: #{tpu_custom_call.1} parent=1 // pred_fallthru
      _
    // Predicated region
    $region14: #{tpu_custom_call.1} parent=1 // pred_check
      _
    $region15: #{tpu_custom_call.1} parent=1 // pred_check_branch
      %35 = sbr.rel (0) target = $region17
    $region16: #{tpu_custom_call.1} parent=1 // pred_region
      %36 = dma.done [#allocation4], 128
    $region17: #{tpu_custom_call.1} parent=1 // pred_fallthru
      _
    %37 = vsyncpa [#allocation3], 1
    %38 = vsyncpa [#allocation4], 1

// kernel: tpu_custom_call.1
$region0: #{tpu_custom_call.1}
  #allocation0 [shape = 'u32[]', space=smem, size = 0x4, offset = 0x4, fixed_abs, tag = 'smem constant byte address 0x4 - core index']
  #allocation1 [shape = 'u32[144,128]{1,0:T(1,128)}', space=vmem, size = 0x12000, scoped, tag = 'internal scratch']
  %s0 = inlined_call_operand.vmem [shape: f32[128,48], index: 0, kind: input, shape index: {}]
  %s1 = inlined_call_operand.vmem [shape: bf16[48,32], index: 1, kind: input, shape index: {}]
  %s2 = inlined_call_operand.vmem [shape: f32[1,32], index: 2, kind: input, shape index: {}]
  %s3 = inlined_call_operand.vmem [shape: f32[1,32], index: 3, kind: input, shape index: {}]
  %s4 = inlined_call_operand.vmem [shape: f32[1,32], index: 4, kind: input, shape index: {}]
  %s5 = inlined_call_operand.vmem [shape: f32[128,32], index: 5, kind: output, shape index: {}]
  %s6 = sld [smem:[#allocation0]]
  $region30: #{tpu_custom_call.1} parent=0
    _
  %s8 = ssub.s32 1, %s6
  %s9 = scalar_select 0, %s8, %s6
  // Predicated region
  $region2: #{tpu_custom_call.1} parent=0 // pred_check
    _
  $region3: #{tpu_custom_call.1} parent=0 // pred_check_branch
    %11 = sbr.rel (0) target = $region5
  $region4: #{tpu_custom_call.1} parent=0 // pred_region
    _
  $region5: #{tpu_custom_call.1} parent=0 // pred_fallthru
    _
  // Predicated region
  $region6: #{tpu_custom_call.1} parent=0 // pred_check
    _
  $region7: #{tpu_custom_call.1} parent=0 // pred_check_branch
    %13 = sbr.rel (0) target = $region9
  $region8: #{tpu_custom_call.1} parent=0 // pred_region
    _
  $region9: #{tpu_custom_call.1} parent=0 // pred_fallthru
    _
  // Predicated region
  $region10: #{tpu_custom_call.1} parent=0 // pred_check
    _
  $region11: #{tpu_custom_call.1} parent=0 // pred_check_branch
    %15 = sbr.rel (0) target = $region13
  $region12: #{tpu_custom_call.1} parent=0 // pred_region
    _
  $region13: #{tpu_custom_call.1} parent=0 // pred_fallthru
    _
  // Predicated region
  $region14: #{tpu_custom_call.1} parent=0 // pred_check
    _
  $region15: #{tpu_custom_call.1} parent=0 // pred_check_branch
    %17 = sbr.rel (0) target = $region17
  $region16: #{tpu_custom_call.1} parent=0 // pred_region
    _
  $region17: #{tpu_custom_call.1} parent=0 // pred_fallthru
    _
  // Predicated region
  $region18: #{tpu_custom_call.1} parent=0 // pred_check
    _
  $region19: #{tpu_custom_call.1} parent=0 // pred_check_branch
    %19 = sbr.rel (0) target = $region21
  $region20: #{tpu_custom_call.1} parent=0 // pred_region
    _
  $region21: #{tpu_custom_call.1} parent=0 // pred_fallthru
    _
  %v21 = vld [vmem:[%s0] sm:$0xff]
  %v22 = vld [vmem:[%s0 + $0x8] sm:$0xff]
  %v23 = vld [vmem:[%s0 + $0x10] sm:$0xff]
  %v24 = vld [vmem:[%s0 + $0x18] sm:$0xff]
  %v25 = vld [vmem:[%s0 + $0x20] sm:$0xff]
  %v26 = vld [vmem:[%s0 + $0x28] sm:$0xff]
  %v27 = vld [vmem:[%s0 + $0x30] sm:$0xff]
  %v28 = vld [vmem:[%s0 + $0x38] sm:$0xff]
  %v29 = vld [vmem:[%s0 + $0x40] sm:$0xff]
  %v30 = vld [vmem:[%s0 + $0x48] sm:$0xff]
  %v31 = vld [vmem:[%s0 + $0x50] sm:$0xff]
  %v32 = vld [vmem:[%s0 + $0x58] sm:$0xff]
  %v33 = vld [vmem:[%s0 + $0x60] sm:$0xff]
  %v34 = vld [vmem:[%s0 + $0x68] sm:$0xff]
  %v35 = vld [vmem:[%s0 + $0x70] sm:$0xff]
  %v36 = vld [vmem:[%s0 + $0x78] sm:$0xff]
  %v37 = vpack.c.bf16 %v22, %v21
  %v38 = vpack.c.bf16 %v24, %v23
  %v39 = vpack.c.bf16 %v26, %v25
  %v40 = vpack.c.bf16 %v28, %v27
  %v41 = vpack.c.bf16 %v30, %v29
  %v42 = vpack.c.bf16 %v32, %v31
  %v43 = vpack.c.bf16 %v34, %v33
  %v44 = vpack.c.bf16 %v36, %v35
  %v45 = vld [vmem:[%s1] sm:$0xf]
  %v46 = vld [vmem:[%s1 + $0x4] sm:$0xf]
  %v47 = vld [vmem:[%s1 + $0x8] sm:$0xf]
  %v48 = vld [vmem:[%s1 + $0xc] sm:$0xf]
  %v49 = vld [vmem:[%s1 + $0x10] sm:$0xf]
  %v50 = vld [vmem:[%s1 + $0x14] sm:$0xf]
  %v51 = vld [vmem:[%s2] sm:$0x1]
  %v53 = vlaneseq
  %v54 = vshrl.u32 %v53, 7
  %v55 = vsub.s32 0, %v54
  %v56 = vrot.slane %v51, %v55
  %v64 = vunpack.c.l.b16 %v45
  %v65 = vunpack.c.l.b16 %v46
  %v66 = vunpack.c.l.b16 %v47
  %v67 = vunpack.c.l.b16 %v48
  %v68 = vunpack.c.l.b16 %v49
  %v69 = vunpack.c.l.b16 %v50
  %v70 = vpack.c.b16 %v65, %v64
  %v71 = vpack.c.b16 %v67, %v66
  %v72 = vpack.c.b16 %v69, %v68
  %vm76 = vcmask 392192
  %v78 = vsel %vm76, %v37, 0
  %v81 = vsel %vm76, %v38, 0
  %v84 = vsel %vm76, %v39, 0
  %v87 = vsel %vm76, %v40, 0
  %v90 = vsel %vm76, %v41, 0
  %v93 = vsel %vm76, %v42, 0
  %v96 = vsel %vm76, %v43, 0
  %v99 = vsel %vm76, %v44, 0
  %101 = vmatprep.subr.bf16.mxu0 0
  %102 = vmatpush1.bf16.msra.mxu0 %v70
  %103 = vmatprep.subr.bf16.mxu0 0
  %104 = vmatpush1.bf16.msra.mxu0 %v71
  %105 = vmatprep.subr.bf16.mxu0 0
  %106 = vmatpush1.bf16.msra.mxu0 %v72
  %107 = vmatprep.subr.bf16.mxu0 0
  %108 = vmatpush1.bf16.msra.mxu0 0
  %109 = vmatprep.subr.bf16.mxu0 0
  %110 = vmatpush1.bf16.msra.mxu0 0
  %111 = vmatprep.subr.bf16.mxu0 0
  %112 = vmatpush1.bf16.msra.mxu0 0
  %113 = vmatprep.subr.bf16.mxu0 0
  %114 = vmatpush1.bf16.msra.mxu0 0
  %115 = vmatprep.subr.bf16.mxu0 0
  %116 = vmatpush1.bf16.msra.mxu0 0
  %117 = vmatprep.subr.bf16.mxu0 0
  %118 = vmatpush1.bf16.msra.mxu0 0
  %119 = vmatprep.subr.bf16.mxu0 0
  %120 = vmatpush1.bf16.msra.mxu0 0
  %121 = vmatprep.subr.bf16.mxu0 0
  %122 = vmatpush1.bf16.msra.mxu0 0
  %123 = vmatprep.subr.bf16.mxu0 0
  %124 = vmatpush1.bf16.msra.mxu0 0
  %125 = vmatprep.subr.bf16.mxu0 0
  %126 = vmatpush1.bf16.msra.mxu0 0
  %127 = vmatprep.subr.bf16.mxu0 0
  %128 = vmatpush1.bf16.msra.mxu0 0
  %129 = vmatprep.subr.bf16.mxu0 0
  %130 = vmatpush1.bf16.msra.mxu0 0
  %131 = vmatprep.subr.bf16.mxu0 0
  %132 = vmatpush1.bf16.msra.mxu0 0
  %133 = vmatprep.mubr.bf16.mxu0 0
  %134 = vmatmul.mubr.bf16.gmra.mrb[0].mxu0 %v78
  %v135 = vpop.f32.mrb[0].mxu0
  %v136 = vadd.f32 %v56, %v135
  %v137 = vpop.f32.mrb[0].mxu0
  %v138 = vpop.f32.mrb[0].mxu0
  %v139 = vadd.f32 %v56, %v138
  %v140 = vpop.f32.mrb[0].mxu0
  %141 = vmatprep.mubr.bf16.mxu0 0
  %142 = vmatmul.mubr.bf16.gmra.mrb[0].mxu0 %v81
  %v143 = vpop.f32.mrb[0].mxu0
  %v144 = vadd.f32 %v56, %v143
  %v145 = vpop.f32.mrb[0].mxu0
  %v146 = vpop.f32.mrb[0].mxu0
  %v147 = vadd.f32 %v56, %v146
  %v148 = vpop.f32.mrb[0].mxu0
  %149 = vmatprep.mubr.bf16.mxu0 0
  %150 = vmatmul.mubr.bf16.gmra.mrb[0].mxu0 %v84
  %v151 = vpop.f32.mrb[0].mxu0
  %v152 = vadd.f32 %v56, %v151
  %v153 = vpop.f32.mrb[0].mxu0
  %v154 = vpop.f32.mrb[0].mxu0
  %v155 = vadd.f32 %v56, %v154
  %v156 = vpop.f32.mrb[0].mxu0
  %157 = vmatprep.mubr.bf16.mxu0 0
  %158 = vmatmul.mubr.bf16.gmra.mrb[0].mxu0 %v87
  %v159 = vpop.f32.mrb[0].mxu0
  %v160 = vadd.f32 %v56, %v159
  %v161 = vpop.f32.mrb[0].mxu0
  %v162 = vpop.f32.mrb[0].mxu0
  %v163 = vadd.f32 %v56, %v162
  %v164 = vpop.f32.mrb[0].mxu0
  %165 = vmatprep.mubr.bf16.mxu0 0
  %166 = vmatmul.mubr.bf16.gmra.mrb[0].mxu0 %v90
  %v167 = vpop.f32.mrb[0].mxu0
  %v168 = vadd.f32 %v56, %v167
  %v169 = vpop.f32.mrb[0].mxu0
  %v170 = vpop.f32.mrb[0].mxu0
  %v171 = vadd.f32 %v56, %v170
  %v172 = vpop.f32.mrb[0].mxu0
  %173 = vmatprep.mubr.bf16.mxu0 0
  %174 = vmatmul.mubr.bf16.gmra.mrb[0].mxu0 %v93
  %v175 = vpop.f32.mrb[0].mxu0
  %v176 = vadd.f32 %v56, %v175
  %v177 = vpop.f32.mrb[0].mxu0
  %v178 = vpop.f32.mrb[0].mxu0
  %v179 = vadd.f32 %v56, %v178
  %v180 = vpop.f32.mrb[0].mxu0
  %181 = vmatprep.mubr.bf16.mxu0 0
  %182 = vmatmul.mubr.bf16.gmra.mrb[0].mxu0 %v96
  %v183 = vpop.f32.mrb[0].mxu0
  %v184 = vadd.f32 %v56, %v183
  %v185 = vpop.f32.mrb[0].mxu0
  %v186 = vpop.f32.mrb[0].mxu0
  %v187 = vadd.f32 %v56, %v186
  %v188 = vpop.f32.mrb[0].mxu0
  %189 = vmatprep.mubr.bf16.mxu0 0
  %190 = vmatmul.mubr.bf16.gmra.mrb[0].mxu0 %v99
  %v191 = vpop.f32.mrb[0].mxu0
  %v192 = vadd.f32 %v56, %v191
  %v193 = vpop.f32.mrb[0].mxu0
  %v194 = vpop.f32.mrb[0].mxu0
  %v195 = vadd.f32 %v56, %v194
  %v196 = vpop.f32.mrb[0].mxu0
  %197 = vdwg.mxu0
  %v198 = vld [vmem:[%s3] sm:$0x1]
  %v199 = vld [vmem:[%s4] sm:$0x1]
  %vm200 = vcmask 261120
  %v201 = vsel %vm200, %v136, 0.0
  %202 = vadd.xlane.f32.xlu0 %v201
  %v203 = vpop.xlane.xlu0 %202
  %v204 = vsel %vm200, %v139, 0.0
  %205 = vadd.xlane.f32.xlu0 %v204
  %v206 = vpop.xlane.xlu0 %205
  %v207 = vsel %vm200, %v144, 0.0
  %208 = vadd.xlane.f32.xlu0 %v207
  %v209 = vpop.xlane.xlu0 %208
  %v210 = vsel %vm200, %v147, 0.0
  %211 = vadd.xlane.f32.xlu0 %v210
  %v212 = vpop.xlane.xlu0 %211
  %v213 = vsel %vm200, %v152, 0.0
  %214 = vadd.xlane.f32.xlu0 %v213
  %v215 = vpop.xlane.xlu0 %214
  %v216 = vsel %vm200, %v155, 0.0
  %217 = vadd.xlane.f32.xlu0 %v216
  %v218 = vpop.xlane.xlu0 %217
  %v219 = vsel %vm200, %v160, 0.0
  %220 = vadd.xlane.f32.xlu0 %v219
  %v221 = vpop.xlane.xlu0 %220
  %v222 = vsel %vm200, %v163, 0.0
  %223 = vadd.xlane.f32.xlu0 %v222
  %v224 = vpop.xlane.xlu0 %223
  %v225 = vsel %vm200, %v168, 0.0
  %226 = vadd.xlane.f32.xlu0 %v225
  %v227 = vpop.xlane.xlu0 %226
  %v228 = vsel %vm200, %v171, 0.0
  %229 = vadd.xlane.f32.xlu0 %v228
  %v230 = vpop.xlane.xlu0 %229
  %v231 = vsel %vm200, %v176, 0.0
  %232 = vadd.xlane.f32.xlu0 %v231
  %v233 = vpop.xlane.xlu0 %232
  %v234 = vsel %vm200, %v179, 0.0
  %235 = vadd.xlane.f32.xlu0 %v234
  %v236 = vpop.xlane.xlu0 %235
  %v237 = vsel %vm200, %v184, 0.0
  %238 = vadd.xlane.f32.xlu0 %v237
  %v239 = vpop.xlane.xlu0 %238
  %v240 = vsel %vm200, %v187, 0.0
  %241 = vadd.xlane.f32.xlu0 %v240
  %v242 = vpop.xlane.xlu0 %241
  %v243 = vsel %vm200, %v192, 0.0
  %244 = vadd.xlane.f32.xlu0 %v243
  %v245 = vpop.xlane.xlu0 %244
  %v246 = vsel %vm200, %v195, 0.0
  %247 = vadd.xlane.f32.xlu0 %v246
  %v248 = vpop.xlane.xlu0 %247
  %v249 = vrcp.pop 32.0
  %v250 = vmul.f32 %v203, %v249
  %v251 = vmul.f32 %v206, %v249
  %v252 = vmul.f32 %v209, %v249
  %v253 = vmul.f32 %v212, %v249
  %v254 = vmul.f32 %v215, %v249
  %v255 = vmul.f32 %v218, %v249
  %v256 = vmul.f32 %v221, %v249
  %v257 = vmul.f32 %v224, %v249
  %v258 = vmul.f32 %v227, %v249
  %v259 = vmul.f32 %v230, %v249
  %v260 = vmul.f32 %v233, %v249
  %v261 = vmul.f32 %v236, %v249
  %v262 = vmul.f32 %v239, %v249
  %v263 = vmul.f32 %v242, %v249
  %v264 = vmul.f32 %v245, %v249
  %v265 = vmul.f32 %v248, %v249
  %v266 = vsub.f32 %v136, %v250
  %v267 = vsub.f32 %v139, %v251
  %v268 = vsub.f32 %v144, %v252
  %v269 = vsub.f32 %v147, %v253
  %v270 = vsub.f32 %v152, %v254
  %v271 = vsub.f32 %v155, %v255
  %v272 = vsub.f32 %v160, %v256
  %v273 = vsub.f32 %v163, %v257
  %v274 = vsub.f32 %v168, %v258
  %v275 = vsub.f32 %v171, %v259
  %v276 = vsub.f32 %v176, %v260
  %v277 = vsub.f32 %v179, %v261
  %v278 = vsub.f32 %v184, %v262
  %v279 = vsub.f32 %v187, %v263
  %v280 = vsub.f32 %v192, %v264
  %v281 = vsub.f32 %v195, %v265
  %v282 = vmul.f32 %v266, %v266
  %v283 = vmul.f32 %v267, %v267
  %v284 = vmul.f32 %v268, %v268
  %v285 = vmul.f32 %v269, %v269
  %v286 = vmul.f32 %v270, %v270
  %v287 = vmul.f32 %v271, %v271
  %v288 = vmul.f32 %v272, %v272
  %v289 = vmul.f32 %v273, %v273
  %v290 = vmul.f32 %v274, %v274
  %v291 = vmul.f32 %v275, %v275
  %v292 = vmul.f32 %v276, %v276
  %v293 = vmul.f32 %v277, %v277
  %v294 = vmul.f32 %v278, %v278
  %v295 = vmul.f32 %v279, %v279
  %v296 = vmul.f32 %v280, %v280
  %v297 = vmul.f32 %v281, %v281
  %v298 = vsel %vm200, %v282, 0.0
  %299 = vadd.xlane.f32.xlu0 %v298
  %v300 = vpop.xlane.xlu0 %299
  %v301 = vsel %vm200, %v283, 0.0
  %302 = vadd.xlane.f32.xlu0 %v301
  %v303 = vpop.xlane.xlu0 %302
  %v304 = vsel %vm200, %v284, 0.0
  %305 = vadd.xlane.f32.xlu0 %v304
  %v306 = vpop.xlane.xlu0 %305
  %v307 = vsel %vm200, %v285, 0.0
  %308 = vadd.xlane.f32.xlu0 %v307
  %v309 = vpop.xlane.xlu0 %308
  %v310 = vsel %vm200, %v286, 0.0
  %311 = vadd.xlane.f32.xlu0 %v310
  %v312 = vpop.xlane.xlu0 %311
  %v313 = vsel %vm200, %v287, 0.0
  %314 = vadd.xlane.f32.xlu0 %v313
  %v315 = vpop.xlane.xlu0 %314
  %v316 = vsel %vm200, %v288, 0.0
  %317 = vadd.xlane.f32.xlu0 %v316
  %v318 = vpop.xlane.xlu0 %317
  %v319 = vsel %vm200, %v289, 0.0
  %320 = vadd.xlane.f32.xlu0 %v319
  %v321 = vpop.xlane.xlu0 %320
  %v322 = vsel %vm200, %v290, 0.0
  %323 = vadd.xlane.f32.xlu0 %v322
  %v324 = vpop.xlane.xlu0 %323
  %v325 = vsel %vm200, %v291, 0.0
  %326 = vadd.xlane.f32.xlu0 %v325
  %v327 = vpop.xlane.xlu0 %326
  %v328 = vsel %vm200, %v292, 0.0
  %329 = vadd.xlane.f32.xlu0 %v328
  %v330 = vpop.xlane.xlu0 %329
  %v331 = vsel %vm200, %v293, 0.0
  %332 = vadd.xlane.f32.xlu0 %v331
  %v333 = vpop.xlane.xlu0 %332
  %v334 = vsel %vm200, %v294, 0.0
  %335 = vadd.xlane.f32.xlu0 %v334
  %v336 = vpop.xlane.xlu0 %335
  %v337 = vsel %vm200, %v295, 0.0
  %338 = vadd.xlane.f32.xlu0 %v337
  %v339 = vpop.xlane.xlu0 %338
  %v340 = vsel %vm200, %v296, 0.0
  %341 = vadd.xlane.f32.xlu0 %v340
  %v342 = vpop.xlane.xlu0 %341
  %v343 = vsel %vm200, %v297, 0.0
  %344 = vadd.xlane.f32.xlu0 %v343
  %v345 = vpop.xlane.xlu0 %344
  %v346 = vmul.f32 %v300, %v249
  %v347 = vmul.f32 %v303, %v249
  %v348 = vmul.f32 %v306, %v249
  %v349 = vmul.f32 %v309, %v249
  %v350 = vmul.f32 %v312, %v249
  %v351 = vmul.f32 %v315, %v249
  %v352 = vmul.f32 %v318, %v249
  %v353 = vmul.f32 %v321, %v249
  %v354 = vmul.f32 %v324, %v249
  %v355 = vmul.f32 %v327, %v249
  %v356 = vmul.f32 %v330, %v249
  %v357 = vmul.f32 %v333, %v249
  %v358 = vmul.f32 %v336, %v249
  %v359 = vmul.f32 %v339, %v249
  %v360 = vmul.f32 %v342, %v249
  %v361 = vmul.f32 %v345, %v249
  %v362 = vadd.f32 %v346, 1e-05
  %v363 = vadd.f32 %v347, 1e-05
  %v364 = vadd.f32 %v348, 1e-05
  %v365 = vadd.f32 %v349, 1e-05
  %v366 = vadd.f32 %v350, 1e-05
  %v367 = vadd.f32 %v351, 1e-05
  %v368 = vadd.f32 %v352, 1e-05
  %v369 = vadd.f32 %v353, 1e-05
  %v370 = vadd.f32 %v354, 1e-05
  %v371 = vadd.f32 %v355, 1e-05
  %v372 = vadd.f32 %v356, 1e-05
  %v373 = vadd.f32 %v357, 1e-05
  %v374 = vadd.f32 %v358, 1e-05
  %v375 = vadd.f32 %v359, 1e-05
  %v376 = vadd.f32 %v360, 1e-05
  %v377 = vadd.f32 %v361, 1e-05
  %v378 = vrsqrt.pop %v362
  %v379 = vrsqrt.pop %v363
  %v380 = vrsqrt.pop %v364
  %v381 = vrsqrt.pop %v365
  %v382 = vrsqrt.pop %v366
  %v383 = vrsqrt.pop %v367
  %v384 = vrsqrt.pop %v368
  %v385 = vrsqrt.pop %v369
  %v386 = vrsqrt.pop %v370
  %v387 = vrsqrt.pop %v371
  %v388 = vrsqrt.pop %v372
  %v389 = vrsqrt.pop %v373
  %v390 = vrsqrt.pop %v374
  %v391 = vrsqrt.pop %v375
  %v392 = vrsqrt.pop %v376
  %v393 = vrsqrt.pop %v377
  %v394 = vmul.f32 %v266, %v378
  %v395 = vmul.f32 %v267, %v379
  %v396 = vmul.f32 %v268, %v380
  %v397 = vmul.f32 %v269, %v381
  %v398 = vmul.f32 %v270, %v382
  %v399 = vmul.f32 %v271, %v383
  %v400 = vmul.f32 %v272, %v384
  %v401 = vmul.f32 %v273, %v385
  %v402 = vmul.f32 %v274, %v386
  %v403 = vmul.f32 %v275, %v387
  %v404 = vmul.f32 %v276, %v388
  %v405 = vmul.f32 %v277, %v389
  %v406 = vmul.f32 %v278, %v390
  %v407 = vmul.f32 %v279, %v391
  %v408 = vmul.f32 %v280, %v392
  %v409 = vmul.f32 %v281, %v393
  %v411 = vlaneseq
  %v412 = vshrl.u32 %v411, 7
  %v413 = vsub.s32 0, %v412
  %v414 = vrot.slane %v198, %v413
  %v416 = vmul.f32 %v394, %v414
  %v417 = vmul.f32 %v395, %v414
  %v418 = vmul.f32 %v396, %v414
  %v419 = vmul.f32 %v397, %v414
  %v420 = vmul.f32 %v398, %v414
  %v421 = vmul.f32 %v399, %v414
  %v422 = vmul.f32 %v400, %v414
  %v423 = vmul.f32 %v401, %v414
  %v424 = vmul.f32 %v402, %v414
  %v425 = vmul.f32 %v403, %v414
  %v426 = vmul.f32 %v404, %v414
  %v427 = vmul.f32 %v405, %v414
  %v428 = vmul.f32 %v406, %v414
  %v429 = vmul.f32 %v407, %v414
  %v430 = vmul.f32 %v408, %v414
  %v431 = vmul.f32 %v409, %v414
  %v433 = vlaneseq
  %v434 = vshrl.u32 %v433, 7
  %v435 = vsub.s32 0, %v434
  %v436 = vrot.slane %v199, %v435
  %v438 = vadd.f32 %v416, %v436
  %v439 = vadd.f32 %v417, %v436
  %v440 = vadd.f32 %v418, %v436
  %v441 = vadd.f32 %v419, %v436
  %v442 = vadd.f32 %v420, %v436
  %v443 = vadd.f32 %v421, %v436
  %v444 = vadd.f32 %v422, %v436
  %v445 = vadd.f32 %v423, %v436
  %v446 = vadd.f32 %v424, %v436
  %v447 = vadd.f32 %v425, %v436
  %v448 = vadd.f32 %v426, %v436
  %v449 = vadd.f32 %v427, %v436
  %v450 = vadd.f32 %v428, %v436
  %v451 = vadd.f32 %v429, %v436
  %v452 = vadd.f32 %v430, %v436
  %v453 = vadd.f32 %v431, %v436
  %454 = vst.msk [vmem:[%s5] sm:$0xff] %vm200, %v438
  %455 = vst.msk [vmem:[%s5 + $0x8] sm:$0xff] %vm200, %v439
  %456 = vst.msk [vmem:[%s5 + $0x10] sm:$0xff] %vm200, %v440
  %457 = vst.msk [vmem:[%s5 + $0x18] sm:$0xff] %vm200, %v441
  %458 = vst.msk [vmem:[%s5 + $0x20] sm:$0xff] %vm200, %v442
  %459 = vst.msk [vmem:[%s5 + $0x28] sm:$0xff] %vm200, %v443
  %460 = vst.msk [vmem:[%s5 + $0x30] sm:$0xff] %vm200, %v444
  %461 = vst.msk [vmem:[%s5 + $0x38] sm:$0xff] %vm200, %v445
  %462 = vst.msk [vmem:[%s5 + $0x40] sm:$0xff] %vm200, %v446
  %463 = vst.msk [vmem:[%s5 + $0x48] sm:$0xff] %vm200, %v447
  %464 = vst.msk [vmem:[%s5 + $0x50] sm:$0xff] %vm200, %v448
  %465 = vst.msk [vmem:[%s5 + $0x58] sm:$0xff] %vm200, %v449
  %466 = vst.msk [vmem:[%s5 + $0x60] sm:$0xff] %vm200, %v450
  %467 = vst.msk [vmem:[%s5 + $0x68] sm:$0xff] %vm200, %v451
  %468 = vst.msk [vmem:[%s5 + $0x70] sm:$0xff] %vm200, %v452
  %469 = vst.msk [vmem:[%s5 + $0x78] sm:$0xff] %vm200, %v453
  // Predicated region
  $region22: #{tpu_custom_call.1} parent=0 // pred_check
    _
  $region23: #{tpu_custom_call.1} parent=0 // pred_check_branch
    %471 = sbr.rel (0) target = $region25
  $region24: #{tpu_custom_call.1} parent=0 // pred_region
    _
  $region25: #{tpu_custom_call.1} parent=0 // pred_fallthru
    _
  // Predicated region
  $region26: #{tpu_custom_call.1} parent=0 // pred_check
    _
  $region27: #{tpu_custom_call.1} parent=0 // pred_check_branch
    %473 = sbr.rel (0) target = $region29
  $region28: #{tpu_custom_call.1} parent=0 // pred_region
    _
  $region29: #{tpu_custom_call.1} parent=0 // pred_fallthru
    _

</llo_original>
